<compile_context>
chip_gen: v6e
topology: v6e:2x2x1
jax: 0.10.0
libtpu: 0.0.40
codegen_flags: <defaults>
</compile_context>

<pallas_src>
import math

import jax
import jax.numpy as jnp
from jax.experimental import pallas as pl
from jax.experimental.pallas import tpu as pltpu

# ----- module configuration (small, consistent with the nn.Module) -----
D_MODEL    = 32
NUM_HEADS  = 4
NUM_GROUPS = 2
HEAD_DIM   = D_MODEL // NUM_HEADS          # 8
GROUP_DIM  = HEAD_DIM * NUM_GROUPS         # 16
REP        = NUM_HEADS // NUM_GROUPS       # 2
BATCH      = 2
SEQ        = NUM_HEADS                     # torch broadcast requires S == H
BS         = BATCH * SEQ                   # 8 rows total
Q_REP_DIM  = NUM_HEADS * GROUP_DIM         # 64  (q replicated per group)
QKV_DIM    = Q_REP_DIM + 2 * GROUP_DIM     # 96
HG         = NUM_HEADS * NUM_GROUPS        # 8   (head, group) pairs
HH         = NUM_HEADS * NUM_HEADS         # 16  attention-weight columns per row
OUT_DIM    = D_MODEL + HH                  # 48  combined output width
LOG2_G     = NUM_GROUPS.bit_length() - 1   # 1


def gqa_kernel(x_ref, wqkv_ref, bqkv_ref, wfc_ref, bfc_ref, out_ref):
    """Single invocation (no grid): all BATCH*SEQ rows processed at once."""
    f32 = jnp.float32

    # ---- fused (scaled, group-replicated Q | K | V) projection: one matmul ----
    x = x_ref[...]                                                       # (BS, D)
    qkv = jnp.dot(x, wqkv_ref[...], preferred_element_type=f32) + bqkv_ref[...]
    q_rep = qkv[:, :Q_REP_DIM]                                           # (BS, 64) pre-scaled
    k = qkv[:, Q_REP_DIM:Q_REP_DIM + GROUP_DIM]                          # (BS, 16)
    v = qkv[:, Q_REP_DIM + GROUP_DIM:]                                   # (BS, 16)

    # ---- per-batch flatten + sublane broadcast of k / v ----
    # k_exp[b*S + i, m*GD + c] = k[b*S + m, c] : the reference's broadcast
    # matmul indexes keys/values by the head index m (== seq position m).
    def flatten_rows(a):
        blocks = []
        for b in range(BATCH):
            row = jnp.concatenate(
                [a[b * SEQ + m:b * SEQ + m + 1, :] for m in range(SEQ)], axis=1)  # (1, S*GD)
            blocks.append(jnp.broadcast_to(row, (SEQ, SEQ * GROUP_DIM)))
        return jnp.concatenate(blocks, axis=0)                           # (BS, S*GD)

    k_exp = flatten_rows(k)                                              # (BS, 64)
    v_exp = flatten_rows(v)                                              # (BS, 64)

    # ---- tiny constant reduction / expansion matrices, built in-registers ----
    def iota(shape, dim):
        return jax.lax.broadcasted_iota(jnp.int32, shape, dim)

    def onehot(mask):
        return jnp.where(mask, 1.0, 0.0).astype(f32)

    # sum over head_dim within each (head, group) column block
    r_, c_ = iota((Q_REP_DIM, HG), 0), iota((Q_REP_DIM, HG), 1)
    e_score = onehot((r_ >= c_ * HEAD_DIM) & (r_ < (c_ + 1) * HEAD_DIM))     # (64, 8)
    # per-head block sum of exp(scores), broadcast back to the G columns
    a_, b_ = iota((HG, HG), 0), iota((HG, HG), 1)
    e_den = onehot(jnp.right_shift(a_, LOG2_G) == jnp.right_shift(b_, LOG2_G))  # (8, 8)
    # group prob -> H duplicated key columns, scaled by 1/REP (col j in [R*a, R*a+R))
    a_, j_ = iota((HG, HH), 0), iota((HG, HH), 1)
    e_attn = onehot((j_ >= a_ * REP) & (j_ < a_ * REP + REP)) * (1.0 / REP)     # (8, 16)
    # group prob -> broadcast over the group's head_dim value columns
    a_, r_ = iota((HG, Q_REP_DIM), 0), iota((HG, Q_REP_DIM), 1)
    e_exp = onehot((r_ >= a_ * HEAD_DIM) & (r_ < (a_ + 1) * HEAD_DIM))          # (8, 64)
    e_ae = jnp.concatenate([e_attn, e_exp], axis=1)                             # (8, 80)

    # ---- scores + group softmax, batched over every (batch row, head) ----
    s = jnp.dot(q_rep * k_exp, e_score, preferred_element_type=f32)      # (BS, H*G)
    # global per-row shift: constant within every head block, so each head's
    # softmax is unchanged; safe for these magnitudes (no per-head max needed).
    s = s - jnp.max(s, axis=-1, keepdims=True)
    e = jnp.exp(s)                                                       # one EUP exp
    z = jnp.dot(e, e_den, preferred_element_type=f32)                    # per-head denom, broadcast
    p = e / z                                                            # exact (weights are user-visible)

    # ---- fused attention-weight + value expansion: one matmul ----
    ae = jnp.dot(p, e_ae, preferred_element_type=f32)                    # (BS, 16 + 64)
    attn_flat = ae[:, :HH]                                               # (BS, 16)
    pv = ae[:, HH:]                                                      # (BS, 64)

    # ---- fused output projection + ONE lane-dense combined store ----
    y = jnp.dot(pv * v_exp, wfc_ref[...], preferred_element_type=f32) + bfc_ref[...]  # (BS, D)
    out_ref[...] = jnp.concatenate([y, attn_flat], axis=1)               # (BS, D + H*H)


@jax.jit
def gqa_forward(x, Wq, bq, Wk, bk, Wv, bv, Wfc, bfc):
    """Wrapper: packs the nn.Linear weights (layout plumbing) and runs the kernel."""
    B, S, D = x.shape
    assert S == NUM_HEADS, "reference module's broadcast matmul needs seq == num_heads"
    assert D == D_MODEL and B == BATCH

    scale = 1.0 / math.sqrt(HEAD_DIM)

    # Q columns replicated per group and pre-scaled by 1/sqrt(head_dim): the
    # kernel then needs no q slicing/concats and no separate scale multiply.
    wq_rep = jnp.broadcast_to(
        (Wq.T * scale).reshape(D, NUM_HEADS, 1, HEAD_DIM),
        (D, NUM_HEADS, NUM_GROUPS, HEAD_DIM)).reshape(D, Q_REP_DIM)
    bq_rep = jnp.broadcast_to(
        (bq * scale).reshape(NUM_HEADS, 1, HEAD_DIM),
        (NUM_HEADS, NUM_GROUPS, HEAD_DIM)).reshape(Q_REP_DIM)
    w_qkv = jnp.concatenate([wq_rep, Wk.T, Wv.T], axis=1)                # (D, 96)
    b_qkv = jnp.concatenate([bq_rep, bk, bv]).reshape(1, QKV_DIM)        # (1, 96)

    # fc weight expanded so (BS, H*G*hd) @ wfc_big == concat_heads(out) @ Wfc.T:
    # row (m*G*hd + g*hd + d) of wfc_big is Wfc.T[m*hd + d, :] (independent of g).
    wfc_big = jnp.broadcast_to(
        Wfc.T.reshape(NUM_HEADS, 1, HEAD_DIM, D),
        (NUM_HEADS, NUM_GROUPS, HEAD_DIM, D)).reshape(NUM_HEADS * GROUP_DIM, D)
    b_fc = bfc.reshape(1, D)

    x_flat = x.reshape(B * S, D)

    combined = pl.pallas_call(
        gqa_kernel,
        out_shape=jax.ShapeDtypeStruct((B * S, OUT_DIM), jnp.float32),
        in_specs=[pl.BlockSpec(memory_space=pltpu.MemorySpace.VMEM)] * 5,
        out_specs=pl.BlockSpec(memory_space=pltpu.MemorySpace.VMEM),
    )(x_flat, w_qkv, b_qkv, wfc_big, b_fc)

    out = combined[:, :D].reshape(B, S, D)
    attn = combined[:, D:].reshape(B, S, NUM_HEADS, NUM_HEADS).transpose(0, 2, 1, 3)
    return out, attn


def gqa_reference(x, Wq, bq, Wk, bk, Wv, bv, Wfc, bfc):
    """Pure-JAX transcription of the PyTorch forward (for validation)."""
    B, S, D = x.shape
    H, G, hd, R = NUM_HEADS, NUM_GROUPS, HEAD_DIM, REP
    q = x @ Wq.T + bq
    k = x @ Wk.T + bk
    v = x @ Wv.T + bv
    q = q.reshape(B, S, H, hd).transpose(0, 2, 1, 3)                     # (B, H, S, hd)
    k = jnp.tile(k.reshape(B, S, G, hd), (1, 1, 1, R)).reshape(B, S, H, hd)
    v = jnp.tile(v.reshape(B, S, G, hd), (1, 1, 1, R)).reshape(B, S, H, hd)
    scores = jnp.matmul(q, jnp.swapaxes(k, -1, -2)) / math.sqrt(hd)      # broadcast: needs S == H
    attn = jax.nn.softmax(scores, axis=-1)
    out = jnp.matmul(attn, v)                                            # (B, H, S, hd)
    out = out.transpose(0, 2, 1, 3).reshape(B, S, D)
    out = out @ Wfc.T + bfc
    return out, attn


if __name__ == "__main__":
    key = jax.random.PRNGKey(0)
    ks = jax.random.split(key, 9)
    x   = jax.random.normal(ks[0], (BATCH, SEQ, D_MODEL), jnp.float32)
    Wq  = 0.1 * jax.random.normal(ks[1], (D_MODEL, D_MODEL), jnp.float32)
    bq  = 0.1 * jax.random.normal(ks[2], (D_MODEL,), jnp.float32)
    Wk  = 0.1 * jax.random.normal(ks[3], (GROUP_DIM, D_MODEL), jnp.float32)
    bk  = 0.1 * jax.random.normal(ks[4], (GROUP_DIM,), jnp.float32)
    Wv  = 0.1 * jax.random.normal(ks[5], (GROUP_DIM, D_MODEL), jnp.float32)
    bv  = 0.1 * jax.random.normal(ks[6], (GROUP_DIM,), jnp.float32)
    Wfc = 0.1 * jax.random.normal(ks[7], (D_MODEL, D_MODEL), jnp.float32)
    bfc = 0.1 * jax.random.normal(ks[8], (D_MODEL,), jnp.float32)

    out, attn = gqa_forward(x, Wq, bq, Wk, bk, Wv, bv, Wfc, bfc)
    jax.block_until_ready((out, attn))

    out_ref, attn_ref = gqa_reference(x, Wq, bq, Wk, bk, Wv, bv, Wfc, bfc)
    assert out.shape == (BATCH, SEQ, D_MODEL)
    assert attn.shape == (BATCH, NUM_HEADS, SEQ, NUM_HEADS)
    # 2e-3 tolerance absorbs MXU-vs-XLA default f32 matmul pass differences;
    # the softmax itself is now exact (no approximate reciprocal).
    assert jnp.allclose(out, out_ref, atol=2e-3, rtol=2e-3)
    assert jnp.allclose(attn, attn_ref, atol=2e-3, rtol=2e-3)
    print("KERNEL_OK")
</pallas_src>

<mosaic_0001>
module attributes {stable_mosaic.version = 11 : i64} {
  func.func @gqa_kernel(%arg0: memref<8x32xf32, #tpu.memory_space<vmem>>, %arg1: memref<32x96xf32, #tpu.memory_space<vmem>>, %arg2: memref<1x96xf32, #tpu.memory_space<vmem>>, %arg3: memref<64x32xf32, #tpu.memory_space<vmem>>, %arg4: memref<1x32xf32, #tpu.memory_space<vmem>>, %arg5: memref<8x48xf32, #tpu.memory_space<vmem>>) attributes {dimension_semantics = [], scalar_prefetch = 0 : i64, scratch_operands = 0 : i64, tpu.core_type = #tpu.core_type<tc>} {
    %c0 = arith.constant 0 : index
    %c0_0 = arith.constant 0 : index
    %0 = vector.load %arg0[%c0, %c0_0] : memref<8x32xf32, #tpu.memory_space<vmem>>, vector<8x32xf32>
    %c0_1 = arith.constant 0 : index
    %c0_2 = arith.constant 0 : index
    %1 = vector.load %arg1[%c0_1, %c0_2] : memref<32x96xf32, #tpu.memory_space<vmem>>, vector<32x96xf32>
    %cst = arith.constant dense<0.000000e+00> : vector<8x96xf32>
    %2 = tpu.matmul %0, %1, %cst {dimension_numbers = #tpu.dot_dimension_numbers<[1], [0], [0], [1], [0, 0, 1, 1], [], []>} : vector<8x32xf32>, vector<32x96xf32>, vector<8x96xf32> -> vector<8x96xf32>
    %c0_3 = arith.constant 0 : index
    %c0_4 = arith.constant 0 : index
    %3 = vector.load %arg2[%c0_3, %c0_4] : memref<1x96xf32, #tpu.memory_space<vmem>>, vector<1x96xf32>
    %4 = vector.broadcast %3 : vector<1x96xf32> to vector<8x96xf32>
    %5 = arith.addf %2, %4 : vector<8x96xf32>
    %6 = vector.extract_strided_slice %5 {offsets = [0, 0], sizes = [8, 64], strides = [1, 1]} : vector<8x96xf32> to vector<8x64xf32>
    %7 = vector.extract_strided_slice %5 {offsets = [0, 64], sizes = [8, 16], strides = [1, 1]} : vector<8x96xf32> to vector<8x16xf32>
    %8 = vector.extract_strided_slice %5 {offsets = [0, 80], sizes = [8, 16], strides = [1, 1]} : vector<8x96xf32> to vector<8x16xf32>
    %9 = vector.extract_strided_slice %7 {offsets = [0, 0], sizes = [1, 16], strides = [1, 1]} : vector<8x16xf32> to vector<1x16xf32>
    %10 = vector.extract_strided_slice %7 {offsets = [1, 0], sizes = [1, 16], strides = [1, 1]} : vector<8x16xf32> to vector<1x16xf32>
    %11 = vector.extract_strided_slice %7 {offsets = [2, 0], sizes = [1, 16], strides = [1, 1]} : vector<8x16xf32> to vector<1x16xf32>
    %12 = vector.extract_strided_slice %7 {offsets = [3, 0], sizes = [1, 16], strides = [1, 1]} : vector<8x16xf32> to vector<1x16xf32>
    %13 = tpu.concatenate %9, %10, %11, %12 in 1 : vector<1x16xf32>, vector<1x16xf32>, vector<1x16xf32>, vector<1x16xf32> -> vector<1x64xf32>
    %14 = vector.shape_cast %13 : vector<1x64xf32> to vector<1x64xf32>
    %15 = vector.broadcast %14 : vector<1x64xf32> to vector<4x64xf32>
    %16 = vector.extract_strided_slice %7 {offsets = [4, 0], sizes = [1, 16], strides = [1, 1]} : vector<8x16xf32> to vector<1x16xf32>
    %17 = vector.extract_strided_slice %7 {offsets = [5, 0], sizes = [1, 16], strides = [1, 1]} : vector<8x16xf32> to vector<1x16xf32>
    %18 = vector.extract_strided_slice %7 {offsets = [6, 0], sizes = [1, 16], strides = [1, 1]} : vector<8x16xf32> to vector<1x16xf32>
    %19 = vector.extract_strided_slice %7 {offsets = [7, 0], sizes = [1, 16], strides = [1, 1]} : vector<8x16xf32> to vector<1x16xf32>
    %20 = tpu.concatenate %16, %17, %18, %19 in 1 : vector<1x16xf32>, vector<1x16xf32>, vector<1x16xf32>, vector<1x16xf32> -> vector<1x64xf32>
    %21 = vector.shape_cast %20 : vector<1x64xf32> to vector<1x64xf32>
    %22 = vector.broadcast %21 : vector<1x64xf32> to vector<4x64xf32>
    %23 = tpu.concatenate %15, %22 in 0 : vector<4x64xf32>, vector<4x64xf32> -> vector<8x64xf32>
    %24 = vector.extract_strided_slice %8 {offsets = [0, 0], sizes = [1, 16], strides = [1, 1]} : vector<8x16xf32> to vector<1x16xf32>
    %25 = vector.extract_strided_slice %8 {offsets = [1, 0], sizes = [1, 16], strides = [1, 1]} : vector<8x16xf32> to vector<1x16xf32>
    %26 = vector.extract_strided_slice %8 {offsets = [2, 0], sizes = [1, 16], strides = [1, 1]} : vector<8x16xf32> to vector<1x16xf32>
    %27 = vector.extract_strided_slice %8 {offsets = [3, 0], sizes = [1, 16], strides = [1, 1]} : vector<8x16xf32> to vector<1x16xf32>
    %28 = tpu.concatenate %24, %25, %26, %27 in 1 : vector<1x16xf32>, vector<1x16xf32>, vector<1x16xf32>, vector<1x16xf32> -> vector<1x64xf32>
    %29 = vector.shape_cast %28 : vector<1x64xf32> to vector<1x64xf32>
    %30 = vector.broadcast %29 : vector<1x64xf32> to vector<4x64xf32>
    %31 = vector.extract_strided_slice %8 {offsets = [4, 0], sizes = [1, 16], strides = [1, 1]} : vector<8x16xf32> to vector<1x16xf32>
    %32 = vector.extract_strided_slice %8 {offsets = [5, 0], sizes = [1, 16], strides = [1, 1]} : vector<8x16xf32> to vector<1x16xf32>
    %33 = vector.extract_strided_slice %8 {offsets = [6, 0], sizes = [1, 16], strides = [1, 1]} : vector<8x16xf32> to vector<1x16xf32>
    %34 = vector.extract_strided_slice %8 {offsets = [7, 0], sizes = [1, 16], strides = [1, 1]} : vector<8x16xf32> to vector<1x16xf32>
    %35 = tpu.concatenate %31, %32, %33, %34 in 1 : vector<1x16xf32>, vector<1x16xf32>, vector<1x16xf32>, vector<1x16xf32> -> vector<1x64xf32>
    %36 = vector.shape_cast %35 : vector<1x64xf32> to vector<1x64xf32>
    %37 = vector.broadcast %36 : vector<1x64xf32> to vector<4x64xf32>
    %38 = tpu.concatenate %30, %37 in 0 : vector<4x64xf32>, vector<4x64xf32> -> vector<8x64xf32>
    %39 = tpu.iota {dimensions = array<i32: 0>} : vector<64x8xi32>
    %40 = tpu.iota {dimensions = array<i32: 1>} : vector<64x8xi32>
    %c8_i32 = arith.constant 8 : i32
    %41 = vector.broadcast %c8_i32 : i32 to vector<64x8xi32>
    %42 = arith.muli %40, %41 : vector<64x8xi32>
    %43 = arith.cmpi sge, %39, %42 : vector<64x8xi32>
    %c1_i32 = arith.constant 1 : i32
    %44 = vector.broadcast %c1_i32 : i32 to vector<64x8xi32>
    %45 = arith.addi %40, %44 : vector<64x8xi32>
    %c8_i32_5 = arith.constant 8 : i32
    %46 = vector.broadcast %c8_i32_5 : i32 to vector<64x8xi32>
    %47 = arith.muli %45, %46 : vector<64x8xi32>
    %48 = arith.cmpi slt, %39, %47 : vector<64x8xi32>
    %49 = arith.andi %43, %48 : vector<64x8xi1>
    %cst_6 = arith.constant 1.000000e+00 : f32
    %cst_7 = arith.constant 0.000000e+00 : f32
    %50 = vector.broadcast %cst_6 : f32 to vector<64x8xf32>
    %51 = vector.broadcast %cst_7 : f32 to vector<64x8xf32>
    %52 = arith.select %49, %50, %51 : vector<64x8xi1>, vector<64x8xf32>
    %53 = tpu.iota {dimensions = array<i32: 0>} : vector<8x8xi32>
    %54 = tpu.iota {dimensions = array<i32: 1>} : vector<8x8xi32>
    %c1_i32_8 = arith.constant 1 : i32
    %55 = vector.broadcast %c1_i32_8 : i32 to vector<8x8xi32>
    %56 = arith.shrsi %53, %55 : vector<8x8xi32>
    %c1_i32_9 = arith.constant 1 : i32
    %57 = vector.broadcast %c1_i32_9 : i32 to vector<8x8xi32>
    %58 = arith.shrsi %54, %57 : vector<8x8xi32>
    %59 = arith.cmpi eq, %56, %58 : vector<8x8xi32>
    %cst_10 = arith.constant 1.000000e+00 : f32
    %cst_11 = arith.constant 0.000000e+00 : f32
    %60 = vector.broadcast %cst_10 : f32 to vector<8x8xf32>
    %61 = vector.broadcast %cst_11 : f32 to vector<8x8xf32>
    %62 = arith.select %59, %60, %61 : vector<8x8xi1>, vector<8x8xf32>
    %63 = tpu.iota {dimensions = array<i32: 0>} : vector<8x16xi32>
    %64 = tpu.iota {dimensions = array<i32: 1>} : vector<8x16xi32>
    %c2_i32 = arith.constant 2 : i32
    %65 = vector.broadcast %c2_i32 : i32 to vector<8x16xi32>
    %66 = arith.muli %63, %65 : vector<8x16xi32>
    %67 = arith.cmpi sge, %64, %66 : vector<8x16xi32>
    %c2_i32_12 = arith.constant 2 : i32
    %68 = vector.broadcast %c2_i32_12 : i32 to vector<8x16xi32>
    %69 = arith.muli %63, %68 : vector<8x16xi32>
    %c2_i32_13 = arith.constant 2 : i32
    %70 = vector.broadcast %c2_i32_13 : i32 to vector<8x16xi32>
    %71 = arith.addi %69, %70 : vector<8x16xi32>
    %72 = arith.cmpi slt, %64, %71 : vector<8x16xi32>
    %73 = arith.andi %67, %72 : vector<8x16xi1>
    %cst_14 = arith.constant 1.000000e+00 : f32
    %cst_15 = arith.constant 0.000000e+00 : f32
    %74 = vector.broadcast %cst_14 : f32 to vector<8x16xf32>
    %75 = vector.broadcast %cst_15 : f32 to vector<8x16xf32>
    %76 = arith.select %73, %74, %75 : vector<8x16xi1>, vector<8x16xf32>
    %cst_16 = arith.constant 5.000000e-01 : f32
    %77 = vector.broadcast %cst_16 : f32 to vector<8x16xf32>
    %78 = arith.mulf %76, %77 : vector<8x16xf32>
    %79 = tpu.iota {dimensions = array<i32: 0>} : vector<8x64xi32>
    %80 = tpu.iota {dimensions = array<i32: 1>} : vector<8x64xi32>
    %c8_i32_17 = arith.constant 8 : i32
    %81 = vector.broadcast %c8_i32_17 : i32 to vector<8x64xi32>
    %82 = arith.muli %79, %81 : vector<8x64xi32>
    %83 = arith.cmpi sge, %80, %82 : vector<8x64xi32>
    %c1_i32_18 = arith.constant 1 : i32
    %84 = vector.broadcast %c1_i32_18 : i32 to vector<8x64xi32>
    %85 = arith.addi %79, %84 : vector<8x64xi32>
    %c8_i32_19 = arith.constant 8 : i32
    %86 = vector.broadcast %c8_i32_19 : i32 to vector<8x64xi32>
    %87 = arith.muli %85, %86 : vector<8x64xi32>
    %88 = arith.cmpi slt, %80, %87 : vector<8x64xi32>
    %89 = arith.andi %83, %88 : vector<8x64xi1>
    %cst_20 = arith.constant 1.000000e+00 : f32
    %cst_21 = arith.constant 0.000000e+00 : f32
    %90 = vector.broadcast %cst_20 : f32 to vector<8x64xf32>
    %91 = vector.broadcast %cst_21 : f32 to vector<8x64xf32>
    %92 = arith.select %89, %90, %91 : vector<8x64xi1>, vector<8x64xf32>
    %93 = tpu.concatenate %78, %92 in 1 : vector<8x16xf32>, vector<8x64xf32> -> vector<8x80xf32>
    %94 = arith.mulf %6, %23 : vector<8x64xf32>
    %cst_22 = arith.constant dense<0.000000e+00> : vector<8x8xf32>
    %95 = tpu.matmul %94, %52, %cst_22 {dimension_numbers = #tpu.dot_dimension_numbers<[1], [0], [0], [1], [0, 0, 1, 1], [], []>} : vector<8x64xf32>, vector<64x8xf32>, vector<8x8xf32> -> vector<8x8xf32>
    %cst_23 = arith.constant dense<0xFF800000> : vector<8xf32>
    %96 = vector.multi_reduction <maximumf>, %95, %cst_23 [1] : vector<8x8xf32> to vector<8xf32>
    %97 = vector.shape_cast %96 : vector<8xf32> to vector<8x1xf32>
    %98 = vector.broadcast %97 : vector<8x1xf32> to vector<8x8xf32>
    %99 = arith.subf %95, %98 : vector<8x8xf32>
    %100 = math.exp %99 : vector<8x8xf32>
    %cst_24 = arith.constant dense<0.000000e+00> : vector<8x8xf32>
    %101 = tpu.matmul %100, %62, %cst_24 {dimension_numbers = #tpu.dot_dimension_numbers<[1], [0], [0], [1], [0, 0, 1, 1], [], []>} : vector<8x8xf32>, vector<8x8xf32>, vector<8x8xf32> -> vector<8x8xf32>
    %102 = arith.divf %100, %101 : vector<8x8xf32>
    %cst_25 = arith.constant dense<0.000000e+00> : vector<8x80xf32>
    %103 = tpu.matmul %102, %93, %cst_25 {dimension_numbers = #tpu.dot_dimension_numbers<[1], [0], [0], [1], [0, 0, 1, 1], [], []>} : vector<8x8xf32>, vector<8x80xf32>, vector<8x80xf32> -> vector<8x80xf32>
    %104 = vector.extract_strided_slice %103 {offsets = [0, 0], sizes = [8, 16], strides = [1, 1]} : vector<8x80xf32> to vector<8x16xf32>
    %105 = vector.extract_strided_slice %103 {offsets = [0, 16], sizes = [8, 64], strides = [1, 1]} : vector<8x80xf32> to vector<8x64xf32>
    %106 = arith.mulf %105, %38 : vector<8x64xf32>
    %c0_26 = arith.constant 0 : index
    %c0_27 = arith.constant 0 : index
    %107 = vector.load %arg3[%c0_26, %c0_27] : memref<64x32xf32, #tpu.memory_space<vmem>>, vector<64x32xf32>
    %cst_28 = arith.constant dense<0.000000e+00> : vector<8x32xf32>
    %108 = tpu.matmul %106, %107, %cst_28 {dimension_numbers = #tpu.dot_dimension_numbers<[1], [0], [0], [1], [0, 0, 1, 1], [], []>} : vector<8x64xf32>, vector<64x32xf32>, vector<8x32xf32> -> vector<8x32xf32>
    %c0_29 = arith.constant 0 : index
    %c0_30 = arith.constant 0 : index
    %109 = vector.load %arg4[%c0_29, %c0_30] : memref<1x32xf32, #tpu.memory_space<vmem>>, vector<1x32xf32>
    %110 = vector.broadcast %109 : vector<1x32xf32> to vector<8x32xf32>
    %111 = arith.addf %108, %110 : vector<8x32xf32>
    %112 = tpu.concatenate %111, %104 in 1 : vector<8x32xf32>, vector<8x16xf32> -> vector<8x48xf32>
    %c0_31 = arith.constant 0 : index
    %c0_32 = arith.constant 0 : index
    %113 = vector.load %arg5[%c0_31, %c0_32] : memref<8x48xf32, #tpu.memory_space<vmem>>, vector<8x48xf32>
    tpu.vector_store %arg5[%c0_31, %c0_32], %112 {strides = array<i32>} : memref<8x48xf32, #tpu.memory_space<vmem>>, vector<8x48xf32>,
    return
  }
}

</mosaic_0001>

<llo_original>
// kernel: gqa_forward.1
$region0: #{gqa_forward.1}
  #allocation0 [shape = 'u32[]', space=smem, size = 0x4, offset = 0x4, fixed_abs, tag = 'smem constant byte address 0x4 - core index']
  #allocation1 [shape = 'u32[144,128]{1,0:T(1,128)}', space=vmem, size = 0x12000, scoped, tag = 'internal scratch']
  %s0 = inlined_call_operand.vmem [shape: f32[8,32], index: 0, kind: input, shape index: {}]
  %s1 = inlined_call_operand.vmem [shape: f32[32,96], index: 1, kind: input, shape index: {}]
  %s2 = inlined_call_operand.vmem [shape: f32[1,96], index: 2, kind: input, shape index: {}]
  %s3 = inlined_call_operand.vmem [shape: f32[64,32], index: 3, kind: input, shape index: {}]
  %s4 = inlined_call_operand.vmem [shape: f32[1,32], index: 4, kind: input, shape index: {}]
  %s5 = inlined_call_operand.vmem [shape: f32[8,48], index: 5, kind: output, shape index: {}]
  %s6 = sld [smem:[#allocation0]]
  $region30: #{gqa_forward.1} parent=0
    _
  %s8 = ssub.s32 1, %s6
  %s9 = scalar_select 0, %s8, %s6
  // Predicated region
  $region2: #{gqa_forward.1} parent=0 // pred_check
    _
  $region3: #{gqa_forward.1} parent=0 // pred_check_branch
    %11 = sbr.rel (0) target = $region5
  $region4: #{gqa_forward.1} parent=0 // pred_region
    _
  $region5: #{gqa_forward.1} parent=0 // pred_fallthru
    _
  // Predicated region
  $region6: #{gqa_forward.1} parent=0 // pred_check
    _
  $region7: #{gqa_forward.1} parent=0 // pred_check_branch
    %13 = sbr.rel (0) target = $region9
  $region8: #{gqa_forward.1} parent=0 // pred_region
    _
  $region9: #{gqa_forward.1} parent=0 // pred_fallthru
    _
  // Predicated region
  $region10: #{gqa_forward.1} parent=0 // pred_check
    _
  $region11: #{gqa_forward.1} parent=0 // pred_check_branch
    %15 = sbr.rel (0) target = $region13
  $region12: #{gqa_forward.1} parent=0 // pred_region
    _
  $region13: #{gqa_forward.1} parent=0 // pred_fallthru
    _
  // Predicated region
  $region14: #{gqa_forward.1} parent=0 // pred_check
    _
  $region15: #{gqa_forward.1} parent=0 // pred_check_branch
    %17 = sbr.rel (0) target = $region17
  $region16: #{gqa_forward.1} parent=0 // pred_region
    _
  $region17: #{gqa_forward.1} parent=0 // pred_fallthru
    _
  // Predicated region
  $region18: #{gqa_forward.1} parent=0 // pred_check
    _
  $region19: #{gqa_forward.1} parent=0 // pred_check_branch
    %19 = sbr.rel (0) target = $region21
  $region20: #{gqa_forward.1} parent=0 // pred_region
    _
  $region21: #{gqa_forward.1} parent=0 // pred_fallthru
    _
  %v20 = vld [vmem:[%s0] sm:$0xff]
  %v21 = vld [vmem:[%s1] sm:$0xff]
  %v22 = vld [vmem:[%s1 + $0x8] sm:$0xff]
  %v23 = vld [vmem:[%s1 + $0x10] sm:$0xff]
  %v24 = vld [vmem:[%s1 + $0x18] sm:$0xff]
  %v25 = vld [vmem:[%s2] sm:$0x1]
  %v27 = vlaneseq
  %v28 = vshrl.u32 %v27, 7
  %v29 = vsub.s32 0, %v28
  %v30 = vrot.slane %v25, %v29
  %vm32 = vcmask 261120
  %v34 = vsel %vm32, %v20, 0
  %36 = vmatprep.subr.mxu0 0.0
  %37 = vmatpush1.msra.mxu0 0.0
  %38 = vmatprep.subr.mxu0 0.0
  %39 = vmatpush1.msra.mxu0 0.0
  %40 = vmatprep.subr.mxu0 0.0
  %41 = vmatpush1.msra.mxu0 0.0
  %42 = vmatprep.subr.mxu0 0.0
  %43 = vmatpush1.msra.mxu0 0.0
  %44 = vmatprep.subr.mxu0 0.0
  %45 = vmatpush1.msra.mxu0 0.0
  %46 = vmatprep.subr.mxu0 0.0
  %47 = vmatpush1.msra.mxu0 0.0
  %48 = vmatprep.subr.mxu0 0.0
  %49 = vmatpush1.msra.mxu0 0.0
  %50 = vmatprep.subr.mxu0 0.0
  %51 = vmatpush1.msra.mxu0 0.0
  %52 = vmatprep.subr.mxu0 0.0
  %53 = vmatpush1.msra.mxu0 0.0
  %54 = vmatprep.subr.mxu0 0.0
  %55 = vmatpush1.msra.mxu0 0.0
  %56 = vmatprep.subr.mxu0 0.0
  %57 = vmatpush1.msra.mxu0 0.0
  %58 = vmatprep.subr.mxu0 0.0
  %59 = vmatpush1.msra.mxu0 0.0
  %60 = vmatprep.subr.mxu0 0.0
  %61 = vmatpush1.msra.mxu0 %v24
  %62 = vmatprep.subr.mxu0 0.0
  %63 = vmatpush1.msra.mxu0 %v23
  %64 = vmatprep.subr.mxu0 0.0
  %65 = vmatpush1.msra.mxu0 %v22
  %66 = vmatprep.subr.mxu0 0.0
  %67 = vmatpush1.msra.mxu0 %v21
  %68 = vmatprep.subr.mxu0 0.0
  %69 = vmatpush2.msra.mxu0 0.0
  %70 = vmatprep.subr.mxu0 0.0
  %71 = vmatpush2.msra.mxu0 0.0
  %72 = vmatprep.subr.mxu0 0.0
  %73 = vmatpush2.msra.mxu0 0.0
  %74 = vmatprep.subr.mxu0 0.0
  %75 = vmatpush2.msra.mxu0 0.0
  %76 = vmatprep.subr.mxu0 0.0
  %77 = vmatpush2.msra.mxu0 0.0
  %78 = vmatprep.subr.mxu0 0.0
  %79 = vmatpush2.msra.mxu0 0.0
  %80 = vmatprep.subr.mxu0 0.0
  %81 = vmatpush2.msra.mxu0 0.0
  %82 = vmatprep.subr.mxu0 0.0
  %83 = vmatpush2.msra.mxu0 0.0
  %84 = vmatprep.subr.mxu0 0.0
  %85 = vmatpush2.msra.mxu0 0.0
  %86 = vmatprep.subr.mxu0 0.0
  %87 = vmatpush2.msra.mxu0 0.0
  %88 = vmatprep.subr.mxu0 0.0
  %89 = vmatpush2.msra.mxu0 0.0
  %90 = vmatprep.subr.mxu0 0.0
  %91 = vmatpush2.msra.mxu0 0.0
  %92 = vmatprep.subr.mxu0 0.0
  %93 = vmatpush2.msra.mxu0 0.0
  %94 = vmatprep.subr.mxu0 0.0
  %95 = vmatpush2.msra.mxu0 0.0
  %96 = vmatprep.subr.mxu0 0.0
  %97 = vmatpush2.msra.mxu0 0.0
  %98 = vmatprep.subr.mxu0 0.0
  %99 = vmatpush2.msra.mxu0 0.0
  %100 = vmatprep.mubr.f32.mxu0 0.0
  %101 = vmatmul.mubr.f32.gmra.mxu0 %v34
  %v102 = vpop.f32.mrf.mxu0
  %v103 = vadd.f32 %v30, %v102
  %v104 = vpop.f32.mrf.mxu0
  %105 = vdwg.mxu0
  %107 = vrot.lane.b32.xlu0 %v103, 64
  %v108 = vpop.permute.xlu0 %107
  %v110 = vrot.slane %v103, 1
  %111 = vrot.lane.b32.xlu0 %v110, 80
  %v112 = vpop.permute.xlu0 %111
  %v114 = vrot.slane %v103, 2
  %115 = vrot.lane.b32.xlu0 %v114, 96
  %v116 = vpop.permute.xlu0 %115
  %v118 = vrot.slane %v103, 3
  %119 = vrot.lane.b32.xlu0 %v118, 112
  %v120 = vpop.permute.xlu0 %119
  %vm122 = vcmask 130048
  %v123 = vsel %vm122, %v108, %v112
  %v124 = vsel %vm32, %v123, %v116
  %vm125 = vcmask 392192
  %v126 = vsel %vm125, %v124, %v120
  %v127 = vlaneseq
  %v128 = vshrl.u32 %v127, 7
  %v129 = vsub.s32 0, %v128
  %v130 = vrot.slane %v126, %v129
  %v131 = vlaneseq
  %v132 = vshrl.u32 %v131, 7
  %v133 = vsub.s32 4, %v132
  %v134 = vrot.slane %v126, %v133
  %vm135 = vcmask 1043456
  %v136 = vsel %vm135, %v130, %v134
  %137 = vrot.lane.b32.xlu0 %v103, 48
  %v138 = vpop.permute.xlu0 %137
  %140 = vrot.lane.b32.xlu0 %v110, 64
  %v141 = vpop.permute.xlu0 %140
  %143 = vrot.lane.b32.xlu0 %v114, 80
  %v144 = vpop.permute.xlu0 %143
  %146 = vrot.lane.b32.xlu0 %v118, 96
  %v147 = vpop.permute.xlu0 %146
  %v149 = vsel %vm122, %v138, %v141
  %v150 = vsel %vm32, %v149, %v144
  %v151 = vsel %vm125, %v150, %v147
  %v152 = vlaneseq
  %v153 = vshrl.u32 %v152, 7
  %v154 = vsub.s32 0, %v153
  %v155 = vrot.slane %v151, %v154
  %v156 = vlaneseq
  %v157 = vshrl.u32 %v156, 7
  %v158 = vsub.s32 4, %v157
  %v159 = vrot.slane %v151, %v158
  %v160 = vsel %vm135, %v155, %v159
  %v161 = vlaneseq
  %v162 = vshrl.u32 %v161, 7
  %v163 = vadd.s32 %v162, 8
  %v164 = vadd.s32 %v162, 16
  %v165 = vadd.s32 %v162, 24
  %v166 = vadd.s32 %v162, 32
  %v167 = vadd.s32 %v162, 40
  %v168 = vadd.s32 %v162, 48
  %v169 = vadd.s32 %v162, 56
  %v170 = vlaneseq
  %v171 = vand.u32 %v170, 127
  %v172 = vmul.u32 %v171, 8
  %vm173 = vcmp.ge.s32.totalorder %v162, %v172
  %vm174 = vcmp.ge.s32.totalorder %v163, %v172
  %vm175 = vcmp.ge.s32.totalorder %v164, %v172
  %vm176 = vcmp.ge.s32.totalorder %v165, %v172
  %vm177 = vcmp.ge.s32.totalorder %v166, %v172
  %vm178 = vcmp.ge.s32.totalorder %v167, %v172
  %vm179 = vcmp.ge.s32.totalorder %v168, %v172
  %vm180 = vcmp.ge.s32.totalorder %v169, %v172
  %v181 = vadd.s32 %v171, 1
  %v182 = vmul.u32 %v181, 8
  %vm183 = vcmp.lt.s32.totalorder %v162, %v182
  %vm184 = vcmp.lt.s32.totalorder %v163, %v182
  %vm185 = vcmp.lt.s32.totalorder %v164, %v182
  %vm186 = vcmp.lt.s32.totalorder %v165, %v182
  %vm187 = vcmp.lt.s32.totalorder %v166, %v182
  %vm188 = vcmp.lt.s32.totalorder %v167, %v182
  %vm189 = vcmp.lt.s32.totalorder %v168, %v182
  %vm190 = vcmp.lt.s32.totalorder %v169, %v182
  %vm191 = vmand %vm173, %vm183
  %vm192 = vmand %vm174, %vm184
  %vm193 = vmand %vm175, %vm185
  %vm194 = vmand %vm176, %vm186
  %vm195 = vmand %vm177, %vm187
  %vm196 = vmand %vm178, %vm188
  %vm197 = vmand %vm179, %vm189
  %vm198 = vmand %vm180, %vm190
  %v199 = vsel %vm191, 1.0, 0.0
  %v200 = vsel %vm192, 1.0, 0.0
  %v201 = vsel %vm193, 1.0, 0.0
  %v202 = vsel %vm194, 1.0, 0.0
  %v203 = vsel %vm195, 1.0, 0.0
  %v204 = vsel %vm196, 1.0, 0.0
  %v205 = vsel %vm197, 1.0, 0.0
  %v206 = vsel %vm198, 1.0, 0.0
  %v207 = vshra.s32 %v162, 1
  %v208 = vshra.s32 %v171, 1
  %vm209 = vcmp.eq.s32.totalorder %v207, %v208
  %v210 = vsel %vm209, 1.0, 0.0
  %v211 = vmul.u32 %v162, 2
  %vm212 = vcmp.ge.s32.totalorder %v171, %v211
  %v213 = vadd.s32 %v211, 2
  %vm214 = vcmp.lt.s32.totalorder %v171, %v213
  %vm215 = vmand %vm212, %vm214
  %v216 = vsel %vm215, 1.0, 0.0
  %v217 = vmul.f32 %v216, 0.5
  %v218 = vmul.u32 %v162, 8
  %vm219 = vcmp.ge.s32.totalorder %v171, %v218
  %v220 = vadd.s32 %v162, 1
  %v221 = vmul.u32 %v220, 8
  %vm222 = vcmp.lt.s32.totalorder %v171, %v221
  %vm223 = vmand %vm219, %vm222
  %v224 = vsel %vm223, 1.0, 0.0
  %226 = vrot.lane.b32.xlu0 %v224, 16
  %v227 = vpop.permute.xlu0 %226
  %v229 = vsel %vm122, %v217, %v227
  %v230 = vmul.f32 %v103, %v136
  %vm231 = vcmask 523264
  %v233 = vsel %vm231, %v230, 0
  %235 = vmatprep.subr.mxu0 0.0
  %236 = vmatpush1.msra.mxu0 0.0
  %237 = vmatprep.subr.mxu0 0.0
  %238 = vmatpush1.msra.mxu0 0.0
  %239 = vmatprep.subr.mxu0 0.0
  %240 = vmatpush1.msra.mxu0 0.0
  %241 = vmatprep.subr.mxu0 0.0
  %242 = vmatpush1.msra.mxu0 0.0
  %243 = vmatprep.subr.mxu0 0.0
  %244 = vmatpush1.msra.mxu0 0.0
  %245 = vmatprep.subr.mxu0 0.0
  %246 = vmatpush1.msra.mxu0 0.0
  %247 = vmatprep.subr.mxu0 0.0
  %248 = vmatpush1.msra.mxu0 0.0
  %249 = vmatprep.subr.mxu0 0.0
  %250 = vmatpush1.msra.mxu0 0.0
  %251 = vmatprep.subr.mxu0 0.0
  %252 = vmatpush1.msra.mxu0 %v206
  %253 = vmatprep.subr.mxu0 0.0
  %254 = vmatpush1.msra.mxu0 %v205
  %255 = vmatprep.subr.mxu0 0.0
  %256 = vmatpush1.msra.mxu0 %v204
  %257 = vmatprep.subr.mxu0 0.0
  %258 = vmatpush1.msra.mxu0 %v203
  %259 = vmatprep.subr.mxu0 0.0
  %260 = vmatpush1.msra.mxu0 %v202
  %261 = vmatprep.subr.mxu0 0.0
  %262 = vmatpush1.msra.mxu0 %v201
  %263 = vmatprep.subr.mxu0 0.0
  %264 = vmatpush1.msra.mxu0 %v200
  %265 = vmatprep.subr.mxu0 0.0
  %266 = vmatpush1.msra.mxu0 %v199
  %267 = vmatprep.subr.mxu0 0.0
  %268 = vmatpush2.msra.mxu0 0.0
  %269 = vmatprep.subr.mxu0 0.0
  %270 = vmatpush2.msra.mxu0 0.0
  %271 = vmatprep.subr.mxu0 0.0
  %272 = vmatpush2.msra.mxu0 0.0
  %273 = vmatprep.subr.mxu0 0.0
  %274 = vmatpush2.msra.mxu0 0.0
  %275 = vmatprep.subr.mxu0 0.0
  %276 = vmatpush2.msra.mxu0 0.0
  %277 = vmatprep.subr.mxu0 0.0
  %278 = vmatpush2.msra.mxu0 0.0
  %279 = vmatprep.subr.mxu0 0.0
  %280 = vmatpush2.msra.mxu0 0.0
  %281 = vmatprep.subr.mxu0 0.0
  %282 = vmatpush2.msra.mxu0 0.0
  %283 = vmatprep.subr.mxu0 0.0
  %284 = vmatpush2.msra.mxu0 0.0
  %285 = vmatprep.subr.mxu0 0.0
  %286 = vmatpush2.msra.mxu0 0.0
  %287 = vmatprep.subr.mxu0 0.0
  %288 = vmatpush2.msra.mxu0 0.0
  %289 = vmatprep.subr.mxu0 0.0
  %290 = vmatpush2.msra.mxu0 0.0
  %291 = vmatprep.subr.mxu0 0.0
  %292 = vmatpush2.msra.mxu0 0.0
  %293 = vmatprep.subr.mxu0 0.0
  %294 = vmatpush2.msra.mxu0 0.0
  %295 = vmatprep.subr.mxu0 0.0
  %296 = vmatpush2.msra.mxu0 0.0
  %297 = vmatprep.subr.mxu0 0.0
  %298 = vmatpush2.msra.mxu0 0.0
  %299 = vmatprep.mubr.f32.mxu0 0.0
  %300 = vmatmul.mubr.f32.gmra.mxu0 %v233
  %v301 = vpop.f32.mrf.mxu0
  %v302 = vadd.f32 0.0, %v301
  %v303 = vpop.f32.mrf.mxu0
  %304 = vdwg.mxu0
  %vm305 = vcmask 64512
  %v306 = vsel %vm305, %v302, -inf
  %307 = vmax.xlane.f32.xlu0 %v306
  %v308 = vpop.xlane.xlu0 %307
  %v309 = vsub.f32 %v302, %v308
  %v310 = vmul.f32 %v309, 1.442695
  %v311 = vpow.pop %v310
  %v313 = vsel %vm305, %v311, 0
  %315 = vmatprep.subr.mxu0 0.0
  %316 = vmatpush1.msra.mxu0 0.0
  %317 = vmatprep.subr.mxu0 0.0
  %318 = vmatpush1.msra.mxu0 0.0
  %319 = vmatprep.subr.mxu0 0.0
  %320 = vmatpush1.msra.mxu0 0.0
  %321 = vmatprep.subr.mxu0 0.0
  %322 = vmatpush1.msra.mxu0 0.0
  %323 = vmatprep.subr.mxu0 0.0
  %324 = vmatpush1.msra.mxu0 0.0
  %325 = vmatprep.subr.mxu0 0.0
  %326 = vmatpush1.msra.mxu0 0.0
  %327 = vmatprep.subr.mxu0 0.0
  %328 = vmatpush1.msra.mxu0 0.0
  %329 = vmatprep.subr.mxu0 0.0
  %330 = vmatpush1.msra.mxu0 0.0
  %331 = vmatprep.subr.mxu0 0.0
  %332 = vmatpush1.msra.mxu0 0.0
  %333 = vmatprep.subr.mxu0 0.0
  %334 = vmatpush1.msra.mxu0 0.0
  %335 = vmatprep.subr.mxu0 0.0
  %336 = vmatpush1.msra.mxu0 0.0
  %337 = vmatprep.subr.mxu0 0.0
  %338 = vmatpush1.msra.mxu0 0.0
  %339 = vmatprep.subr.mxu0 0.0
  %340 = vmatpush1.msra.mxu0 0.0
  %341 = vmatprep.subr.mxu0 0.0
  %342 = vmatpush1.msra.mxu0 0.0
  %343 = vmatprep.subr.mxu0 0.0
  %344 = vmatpush1.msra.mxu0 0.0
  %345 = vmatprep.subr.mxu0 0.0
  %346 = vmatpush1.msra.mxu0 %v210
  %347 = vmatprep.subr.mxu0 0.0
  %348 = vmatpush2.msra.mxu0 0.0
  %349 = vmatprep.subr.mxu0 0.0
  %350 = vmatpush2.msra.mxu0 0.0
  %351 = vmatprep.subr.mxu0 0.0
  %352 = vmatpush2.msra.mxu0 0.0
  %353 = vmatprep.subr.mxu0 0.0
  %354 = vmatpush2.msra.mxu0 0.0
  %355 = vmatprep.subr.mxu0 0.0
  %356 = vmatpush2.msra.mxu0 0.0
  %357 = vmatprep.subr.mxu0 0.0
  %358 = vmatpush2.msra.mxu0 0.0
  %359 = vmatprep.subr.mxu0 0.0
  %360 = vmatpush2.msra.mxu0 0.0
  %361 = vmatprep.subr.mxu0 0.0
  %362 = vmatpush2.msra.mxu0 0.0
  %363 = vmatprep.subr.mxu0 0.0
  %364 = vmatpush2.msra.mxu0 0.0
  %365 = vmatprep.subr.mxu0 0.0
  %366 = vmatpush2.msra.mxu0 0.0
  %367 = vmatprep.subr.mxu0 0.0
  %368 = vmatpush2.msra.mxu0 0.0
  %369 = vmatprep.subr.mxu0 0.0
  %370 = vmatpush2.msra.mxu0 0.0
  %371 = vmatprep.subr.mxu0 0.0
  %372 = vmatpush2.msra.mxu0 0.0
  %373 = vmatprep.subr.mxu0 0.0
  %374 = vmatpush2.msra.mxu0 0.0
  %375 = vmatprep.subr.mxu0 0.0
  %376 = vmatpush2.msra.mxu0 0.0
  %377 = vmatprep.subr.mxu0 0.0
  %378 = vmatpush2.msra.mxu0 0.0
  %379 = vmatprep.mubr.f32.mxu0 0.0
  %380 = vmatmul.mubr.f32.gmra.mxu0 %v313
  %v381 = vpop.f32.mrf.mxu0
  %v382 = vadd.f32 0.0, %v381
  %v383 = vpop.f32.mrf.mxu0
  %384 = vdwg.mxu0
  %v385 = vrcp.pop %v382
  %v386 = vmul.f32 %v311, %v385
  %v388 = vsel %vm305, %v386, 0
  %390 = vmatprep.subr.mxu0 0.0
  %391 = vmatpush1.msra.mxu0 0.0
  %392 = vmatprep.subr.mxu0 0.0
  %393 = vmatpush1.msra.mxu0 0.0
  %394 = vmatprep.subr.mxu0 0.0
  %395 = vmatpush1.msra.mxu0 0.0
  %396 = vmatprep.subr.mxu0 0.0
  %397 = vmatpush1.msra.mxu0 0.0
  %398 = vmatprep.subr.mxu0 0.0
  %399 = vmatpush1.msra.mxu0 0.0
  %400 = vmatprep.subr.mxu0 0.0
  %401 = vmatpush1.msra.mxu0 0.0
  %402 = vmatprep.subr.mxu0 0.0
  %403 = vmatpush1.msra.mxu0 0.0
  %404 = vmatprep.subr.mxu0 0.0
  %405 = vmatpush1.msra.mxu0 0.0
  %406 = vmatprep.subr.mxu0 0.0
  %407 = vmatpush1.msra.mxu0 0.0
  %408 = vmatprep.subr.mxu0 0.0
  %409 = vmatpush1.msra.mxu0 0.0
  %410 = vmatprep.subr.mxu0 0.0
  %411 = vmatpush1.msra.mxu0 0.0
  %412 = vmatprep.subr.mxu0 0.0
  %413 = vmatpush1.msra.mxu0 0.0
  %414 = vmatprep.subr.mxu0 0.0
  %415 = vmatpush1.msra.mxu0 0.0
  %416 = vmatprep.subr.mxu0 0.0
  %417 = vmatpush1.msra.mxu0 0.0
  %418 = vmatprep.subr.mxu0 0.0
  %419 = vmatpush1.msra.mxu0 0.0
  %420 = vmatprep.subr.mxu0 0.0
  %421 = vmatpush1.msra.mxu0 %v229
  %422 = vmatprep.subr.mxu0 0.0
  %423 = vmatpush2.msra.mxu0 0.0
  %424 = vmatprep.subr.mxu0 0.0
  %425 = vmatpush2.msra.mxu0 0.0
  %426 = vmatprep.subr.mxu0 0.0
  %427 = vmatpush2.msra.mxu0 0.0
  %428 = vmatprep.subr.mxu0 0.0
  %429 = vmatpush2.msra.mxu0 0.0
  %430 = vmatprep.subr.mxu0 0.0
  %431 = vmatpush2.msra.mxu0 0.0
  %432 = vmatprep.subr.mxu0 0.0
  %433 = vmatpush2.msra.mxu0 0.0
  %434 = vmatprep.subr.mxu0 0.0
  %435 = vmatpush2.msra.mxu0 0.0
  %436 = vmatprep.subr.mxu0 0.0
  %437 = vmatpush2.msra.mxu0 0.0
  %438 = vmatprep.subr.mxu0 0.0
  %439 = vmatpush2.msra.mxu0 0.0
  %440 = vmatprep.subr.mxu0 0.0
  %441 = vmatpush2.msra.mxu0 0.0
  %442 = vmatprep.subr.mxu0 0.0
  %443 = vmatpush2.msra.mxu0 0.0
  %444 = vmatprep.subr.mxu0 0.0
  %445 = vmatpush2.msra.mxu0 0.0
  %446 = vmatprep.subr.mxu0 0.0
  %447 = vmatpush2.msra.mxu0 0.0
  %448 = vmatprep.subr.mxu0 0.0
  %449 = vmatpush2.msra.mxu0 0.0
  %450 = vmatprep.subr.mxu0 0.0
  %451 = vmatpush2.msra.mxu0 0.0
  %452 = vmatprep.subr.mxu0 0.0
  %453 = vmatpush2.msra.mxu0 0.0
  %454 = vmatprep.mubr.f32.mxu0 0.0
  %455 = vmatmul.mubr.f32.gmra.mxu0 %v388
  %v456 = vpop.f32.mrf.mxu0
  %v457 = vadd.f32 0.0, %v456
  %v458 = vpop.f32.mrf.mxu0
  %459 = vdwg.mxu0
  %461 = vrot.lane.b32.xlu0 %v160, 16
  %v462 = vpop.permute.xlu0 %461
  %v464 = vmul.f32 %v457, %v462
  %v465 = vld [vmem:[%s3] sm:$0xff]
  %v466 = vld [vmem:[%s3 + $0x8] sm:$0xff]
  %v467 = vld [vmem:[%s3 + $0x10] sm:$0xff]
  %v468 = vld [vmem:[%s3 + $0x18] sm:$0xff]
  %v469 = vld [vmem:[%s3 + $0x20] sm:$0xff]
  %v470 = vld [vmem:[%s3 + $0x28] sm:$0xff]
  %v471 = vld [vmem:[%s3 + $0x30] sm:$0xff]
  %v472 = vld [vmem:[%s3 + $0x38] sm:$0xff]
  %v473 = vld [vmem:[%s4] sm:$0x1]
  %v475 = vlaneseq
  %v476 = vshrl.u32 %v475, 7
  %v477 = vsub.s32 0, %v476
  %v478 = vrot.slane %v473, %v477
  %481 = vrot.lane.b32.xlu0 %v464, 112
  %v482 = vpop.permute.xlu0 %481
  %v483 = vsel %vm231, %v482, 0
  %485 = vmatprep.subr.mxu0 0.0
  %486 = vmatpush1.msra.mxu0 0.0
  %487 = vmatprep.subr.mxu0 0.0
  %488 = vmatpush1.msra.mxu0 0.0
  %489 = vmatprep.subr.mxu0 0.0
  %490 = vmatpush1.msra.mxu0 0.0
  %491 = vmatprep.subr.mxu0 0.0
  %492 = vmatpush1.msra.mxu0 0.0
  %493 = vmatprep.subr.mxu0 0.0
  %494 = vmatpush1.msra.mxu0 0.0
  %495 = vmatprep.subr.mxu0 0.0
  %496 = vmatpush1.msra.mxu0 0.0
  %497 = vmatprep.subr.mxu0 0.0
  %498 = vmatpush1.msra.mxu0 0.0
  %499 = vmatprep.subr.mxu0 0.0
  %500 = vmatpush1.msra.mxu0 0.0
  %501 = vmatprep.subr.mxu0 0.0
  %502 = vmatpush1.msra.mxu0 %v472
  %503 = vmatprep.subr.mxu0 0.0
  %504 = vmatpush1.msra.mxu0 %v471
  %505 = vmatprep.subr.mxu0 0.0
  %506 = vmatpush1.msra.mxu0 %v470
  %507 = vmatprep.subr.mxu0 0.0
  %508 = vmatpush1.msra.mxu0 %v469
  %509 = vmatprep.subr.mxu0 0.0
  %510 = vmatpush1.msra.mxu0 %v468
  %511 = vmatprep.subr.mxu0 0.0
  %512 = vmatpush1.msra.mxu0 %v467
  %513 = vmatprep.subr.mxu0 0.0
  %514 = vmatpush1.msra.mxu0 %v466
  %515 = vmatprep.subr.mxu0 0.0
  %516 = vmatpush1.msra.mxu0 %v465
  %517 = vmatprep.subr.mxu0 0.0
  %518 = vmatpush2.msra.mxu0 0.0
  %519 = vmatprep.subr.mxu0 0.0
  %520 = vmatpush2.msra.mxu0 0.0
  %521 = vmatprep.subr.mxu0 0.0
  %522 = vmatpush2.msra.mxu0 0.0
  %523 = vmatprep.subr.mxu0 0.0
  %524 = vmatpush2.msra.mxu0 0.0
  %525 = vmatprep.subr.mxu0 0.0
  %526 = vmatpush2.msra.mxu0 0.0
  %527 = vmatprep.subr.mxu0 0.0
  %528 = vmatpush2.msra.mxu0 0.0
  %529 = vmatprep.subr.mxu0 0.0
  %530 = vmatpush2.msra.mxu0 0.0
  %531 = vmatprep.subr.mxu0 0.0
  %532 = vmatpush2.msra.mxu0 0.0
  %533 = vmatprep.subr.mxu0 0.0
  %534 = vmatpush2.msra.mxu0 0.0
  %535 = vmatprep.subr.mxu0 0.0
  %536 = vmatpush2.msra.mxu0 0.0
  %537 = vmatprep.subr.mxu0 0.0
  %538 = vmatpush2.msra.mxu0 0.0
  %539 = vmatprep.subr.mxu0 0.0
  %540 = vmatpush2.msra.mxu0 0.0
  %541 = vmatprep.subr.mxu0 0.0
  %542 = vmatpush2.msra.mxu0 0.0
  %543 = vmatprep.subr.mxu0 0.0
  %544 = vmatpush2.msra.mxu0 0.0
  %545 = vmatprep.subr.mxu0 0.0
  %546 = vmatpush2.msra.mxu0 0.0
  %547 = vmatprep.subr.mxu0 0.0
  %548 = vmatpush2.msra.mxu0 0.0
  %549 = vmatprep.mubr.f32.mxu0 0.0
  %550 = vmatmul.mubr.f32.gmra.mxu0 %v483
  %v551 = vpop.f32.mrf.mxu0
  %v552 = vadd.f32 %v478, %v551
  %v553 = vpop.f32.mrf.mxu0
  %554 = vdwg.mxu0
  %556 = vrot.lane.b32.xlu0 %v457, 32
  %v557 = vpop.permute.xlu0 %556
  %v559 = vsel %vm32, %v552, %v557
  %560 = vst.msk [vmem:[%s5] sm:$0xff] %vm125, %v559
  // Predicated region
  $region22: #{gqa_forward.1} parent=0 // pred_check
    _
  $region23: #{gqa_forward.1} parent=0 // pred_check_branch
    %562 = sbr.rel (0) target = $region25
  $region24: #{gqa_forward.1} parent=0 // pred_region
    _
  $region25: #{gqa_forward.1} parent=0 // pred_fallthru
    _
  // Predicated region
  $region26: #{gqa_forward.1} parent=0 // pred_check
    _
  $region27: #{gqa_forward.1} parent=0 // pred_check_branch
    %564 = sbr.rel (0) target = $region29
  $region28: #{gqa_forward.1} parent=0 // pred_region
    _
  $region29: #{gqa_forward.1} parent=0 // pred_fallthru
    _

</llo_original>
